<compile_context>
chip_gen: v5e
topology: v5e:2x2
jax: 0.10.0
libtpu: 0.0.40
codegen_flags: <defaults>
</compile_context>

<pallas_src>
import jax
import jax.numpy as jnp
from jax import lax
from jax.experimental import pallas as pl
from jax.experimental.pallas import tpu as pltpu


# ------------------------------- kernel ------------------------------------ #

def _fused_gnn_kernel(src_col_ref, dst_col_ref, dst_row_ref, ea_ref, x_ref,
                      w1a0_ref, w1b0_ref, w1c0_ref, b10_ref, w20_ref, b20_ref,
                      wx0_ref,
                      w1a1_ref, w1b1_ref, w1c1_ref, b11_ref, w21_ref, b21_ref,
                      wx1_ref,
                      wout_ref, bout_ref,
                      out_ref):
    E = src_col_ref.shape[0]
    N = x_ref.shape[0]

    # One-hot gather/scatter matrices, built once (VPU compares) and reused by
    # both layers.  The scatter one-hot is built directly in [N, E] form so no
    # XLU transpose is needed.
    iota_en = lax.broadcasted_iota(jnp.int32, (E, N), 1)              # [E, N]
    iota_ne = lax.broadcasted_iota(jnp.int32, (N, E), 0)              # [N, E]
    f_src = (iota_en == src_col_ref[...]).astype(jnp.float32)         # gather x_j
    f_dst = (iota_en == dst_col_ref[...]).astype(jnp.float32)         # gather x_i
    f_dst_t = (iota_ne == dst_row_ref[...]).astype(jnp.float32)       # scatter-add

    ea = ea_ref[...]                                                  # [E, 1]

    def custom_layer(x, w1a, w1b, w1c, b1, w2, b2, wx):
        # Gather node features for every edge (MXU one-hot matmuls).
        x_j = jnp.dot(f_src, x, preferred_element_type=jnp.float32)   # [E, C]
        x_i = jnp.dot(f_dst, x, preferred_element_type=jnp.float32)   # [E, C]
        # Edge MLP: Linear -> SiLU -> Linear (concat removed via split w1).
        h = (jnp.dot(x_i, w1a, preferred_element_type=jnp.float32)
             + jnp.dot(x_j, w1b, preferred_element_type=jnp.float32)
             + ea * w1c                                                # dist term
             + b1)                                                     # [E, 2C]
        h = h * jax.nn.sigmoid(h)                                      # SiLU
        m = jnp.dot(h, w2, preferred_element_type=jnp.float32) + b2    # [E, H]
        # aggr='add' at dst, plus residual lin_x (no bias), then model tanh.
        out_j = jnp.dot(f_dst_t, m, preferred_element_type=jnp.float32)  # [N, H]
        out_x = jnp.dot(x, wx, preferred_element_type=jnp.float32)       # [N, H]
        return jnp.tanh(out_j + out_x)

    x = x_ref[...]
    x = custom_layer(x, w1a0_ref[...], w1b0_ref[...], w1c0_ref[...],
                     b10_ref[...], w20_ref[...], b20_ref[...], wx0_ref[...])
    # F.dropout is identity in eval mode.
    x = custom_layer(x, w1a1_ref[...], w1b1_ref[...], w1c1_ref[...],
                     b11_ref[...], w21_ref[...], b21_ref[...], wx1_ref[...])
    # Final linear into a lane-dense (128-padded) output slab.
    out_ref[...] = (jnp.dot(x, wout_ref[...], preferred_element_type=jnp.float32)
                    + bout_ref[...])


# ------------------------------- wrapper ------------------------------------ #

_VMEM = pl.BlockSpec(memory_space=pltpu.MemorySpace.VMEM)
_LANES = 128


def _layer_cost(E, N, c, h):
    flops = (2 * 2 * E * N * c          # one-hot gathers
             + 2 * 2 * E * c * (2 * c)  # split first edge-MLP linear
             + 2 * E * (2 * c) * h      # second edge-MLP linear
             + 2 * N * E * h            # scatter-add
             + 2 * N * c * h)           # lin_x
    trans = E * (2 * c) + N * h         # sigmoid (SiLU) + tanh
    return flops, trans


def distance_gnn_forward(x, edge_index, edge_attr, params):
    # PyG default flow 'source_to_target': edge_index = [src, dst],
    # x_j = x[src], x_i = x[dst], aggregation at dst.
    src, dst = edge_index[0], edge_index[1]
    N, C = x.shape
    E = src.shape[0]
    p0, p1 = params["layer0"], params["layer1"]
    H = p0["wx"].shape[1]
    O = params["out_w"].shape[1]
    O_pad = ((O + _LANES - 1) // _LANES) * _LANES

    def split_w1(p, c):
        w1 = p["w1"]                      # [2c+1, 2c], rows ordered [x_i, x_j, dist]
        return w1[:c], w1[c:2 * c], w1[2 * c:2 * c + 1]

    w1a0, w1b0, w1c0 = split_w1(p0, C)
    w1a1, w1b1, w1c1 = split_w1(p1, H)

    # Lane-dense final projection: zero-pad to 128 output lanes.
    wout = jnp.zeros((H, O_pad), jnp.float32).at[:, :O].set(params["out_w"])
    bout = jnp.zeros((1, O_pad), jnp.float32).at[:, :O].set(params["out_b"])

    args = (
        src.reshape(E, 1).astype(jnp.int32),
        dst.reshape(E, 1).astype(jnp.int32),
        dst.reshape(1, E).astype(jnp.int32),
        edge_attr.reshape(E, 1).astype(jnp.float32),
        x.astype(jnp.float32),
        w1a0, w1b0, w1c0, p0["b1"], p0["w2"], p0["b2"], p0["wx"],
        w1a1, w1b1, w1c1, p1["b1"], p1["w2"], p1["b2"], p1["wx"],
        wout, bout,
    )

    f0, t0 = _layer_cost(E, N, C, H)
    f1, t1 = _layer_cost(E, N, H, H)
    bytes_accessed = (sum(int(a.size) * a.dtype.itemsize for a in args)
                      + N * O_pad * 4)
    cost = pl.CostEstimate(flops=f0 + f1 + 2 * N * H * O_pad,
                           transcendentals=t0 + t1,
                           bytes_accessed=bytes_accessed)

    y_pad = pl.pallas_call(
        _fused_gnn_kernel,
        out_shape=jax.ShapeDtypeStruct((N, O_pad), jnp.float32),
        in_specs=[_VMEM] * len(args),
        out_specs=_VMEM,
        compiler_params=pltpu.CompilerParams(vmem_limit_bytes=32 * 1024 * 1024),
        cost_estimate=cost,
    )(*args)
    return y_pad[:, :O]


# ------------------------------ param init ---------------------------------- #

def _xavier_normal(key, shape_in_out):
    fan_in, fan_out = shape_in_out
    std = (2.0 / (fan_in + fan_out)) ** 0.5
    return std * jax.random.normal(key, (fan_in, fan_out), jnp.float32)


def _kaiming_uniform(key, shape_in_out):
    fan_in, fan_out = shape_in_out
    bound = 1.0 / (fan_in ** 0.5)
    return jax.random.uniform(key, (fan_in, fan_out), jnp.float32, -bound, bound)


def init_custom_layer_params(key, c_in, c_out):
    k1, k2, k3 = jax.random.split(key, 3)
    # edge_mlp: Linear(2c+1 -> 2c) [xavier_normal, zero bias], SiLU,
    #           Linear(2c -> out) [xavier_normal, zero bias]
    return {
        "w1": _xavier_normal(k1, (2 * c_in + 1, 2 * c_in)),
        "b1": jnp.zeros((1, 2 * c_in), jnp.float32),
        "w2": _xavier_normal(k2, (2 * c_in, c_out)),
        "b2": jnp.zeros((1, c_out), jnp.float32),
        # lin_x: Linear(in -> out, bias=False)
        "wx": _kaiming_uniform(k3, (c_in, c_out)),
    }


def init_params(key, input_dim, hidden_dim, output_dim):
    k0, k1, k2, k3 = jax.random.split(key, 4)
    return {
        "layer0": init_custom_layer_params(k0, input_dim, hidden_dim),
        "layer1": init_custom_layer_params(k1, hidden_dim, hidden_dim),
        "out_w": _kaiming_uniform(k2, (hidden_dim, output_dim)),
        "out_b": jax.random.uniform(
            k3, (1, output_dim), jnp.float32,
            -1.0 / hidden_dim ** 0.5, 1.0 / hidden_dim ** 0.5),
    }


# --------------------------- pure-JAX reference ------------------------------ #

def _ref_layer(x, src, dst, edge_attr, p):
    x_j, x_i = x[src], x[dst]
    e_in = jnp.concatenate([x_i, x_j, edge_attr[:, None]], axis=-1)
    h = e_in @ p["w1"] + p["b1"]
    h = h * jax.nn.sigmoid(h)
    m = h @ p["w2"] + p["b2"]
    out_j = jax.ops.segment_sum(m, dst, num_segments=x.shape[0])
    return out_j + x @ p["wx"]


def _ref_forward(x, edge_index, edge_attr, params):
    src, dst = edge_index[0], edge_index[1]
    x = jnp.tanh(_ref_layer(x, src, dst, edge_attr, params["layer0"]))
    x = jnp.tanh(_ref_layer(x, src, dst, edge_attr, params["layer1"]))
    return x @ params["out_w"] + params["out_b"]


# ---------------------------------- main ------------------------------------ #

if __name__ == "__main__":
    input_dim, hidden_dim, output_dim = 4, 32, 2
    N, E = 16, 32

    key = jax.random.PRNGKey(0)
    kp, kx, ke, kd = jax.random.split(key, 4)

    params = init_params(kp, input_dim, hidden_dim, output_dim)
    x = jax.random.normal(kx, (N, input_dim), jnp.float32)
    edge_index = jax.random.randint(ke, (2, E), 0, N, jnp.int32)
    edge_attr = jax.random.uniform(kd, (E,), jnp.float32, 0.1, 5.0)  # distances

    y = distance_gnn_forward(x, edge_index, edge_attr, params)
    y = jax.block_until_ready(y)

    y_ref = _ref_forward(x, edge_index, edge_attr, params)
    assert y.shape == (N, output_dim)
    assert jnp.allclose(y, y_ref, atol=1e-4, rtol=1e-4), "mismatch vs reference"

    print("KERNEL_OK")
</pallas_src>

<mosaic_0001>
module attributes {stable_mosaic.version = 11 : i64} {
  func.func @_fused_gnn_kernel(%arg0: memref<32x1xi32, #tpu.memory_space<vmem>>, %arg1: memref<32x1xi32, #tpu.memory_space<vmem>>, %arg2: memref<1x32xi32, #tpu.memory_space<vmem>>, %arg3: memref<32x1xf32, #tpu.memory_space<vmem>>, %arg4: memref<16x4xf32, #tpu.memory_space<vmem>>, %arg5: memref<4x8xf32, #tpu.memory_space<vmem>>, %arg6: memref<4x8xf32, #tpu.memory_space<vmem>>, %arg7: memref<1x8xf32, #tpu.memory_space<vmem>>, %arg8: memref<1x8xf32, #tpu.memory_space<vmem>>, %arg9: memref<8x32xf32, #tpu.memory_space<vmem>>, %arg10: memref<1x32xf32, #tpu.memory_space<vmem>>, %arg11: memref<4x32xf32, #tpu.memory_space<vmem>>, %arg12: memref<32x64xf32, #tpu.memory_space<vmem>>, %arg13: memref<32x64xf32, #tpu.memory_space<vmem>>, %arg14: memref<1x64xf32, #tpu.memory_space<vmem>>, %arg15: memref<1x64xf32, #tpu.memory_space<vmem>>, %arg16: memref<64x32xf32, #tpu.memory_space<vmem>>, %arg17: memref<1x32xf32, #tpu.memory_space<vmem>>, %arg18: memref<32x32xf32, #tpu.memory_space<vmem>>, %arg19: memref<32x128xf32, #tpu.memory_space<vmem>>, %arg20: memref<1x128xf32, #tpu.memory_space<vmem>>, %arg21: memref<16x128xf32, #tpu.memory_space<vmem>>) attributes {dimension_semantics = [], scalar_prefetch = 0 : i64, scratch_operands = 0 : i64, tpu.core_type = #tpu.core_type<tc>} {
    %0 = tpu.iota {dimensions = array<i32: 1>} : vector<32x16xi32>
    %1 = tpu.iota {dimensions = array<i32: 0>} : vector<16x32xi32>
    %c0 = arith.constant 0 : index
    %c0_0 = arith.constant 0 : index
    %2 = vector.load %arg0[%c0, %c0_0] : memref<32x1xi32, #tpu.memory_space<vmem>>, vector<32x1xi32>
    %3 = vector.broadcast %2 : vector<32x1xi32> to vector<32x16xi32>
    %4 = arith.cmpi eq, %0, %3 : vector<32x16xi32>
    %5 = arith.extui %4 : vector<32x16xi1> to vector<32x16xi32>
    %6 = arith.sitofp %5 : vector<32x16xi32> to vector<32x16xf32>
    %c0_1 = arith.constant 0 : index
    %c0_2 = arith.constant 0 : index
    %7 = vector.load %arg1[%c0_1, %c0_2] : memref<32x1xi32, #tpu.memory_space<vmem>>, vector<32x1xi32>
    %8 = vector.broadcast %7 : vector<32x1xi32> to vector<32x16xi32>
    %9 = arith.cmpi eq, %0, %8 : vector<32x16xi32>
    %10 = arith.extui %9 : vector<32x16xi1> to vector<32x16xi32>
    %11 = arith.sitofp %10 : vector<32x16xi32> to vector<32x16xf32>
    %c0_3 = arith.constant 0 : index
    %c0_4 = arith.constant 0 : index
    %12 = vector.load %arg2[%c0_3, %c0_4] : memref<1x32xi32, #tpu.memory_space<vmem>>, vector<1x32xi32>
    %13 = vector.broadcast %12 : vector<1x32xi32> to vector<16x32xi32>
    %14 = arith.cmpi eq, %1, %13 : vector<16x32xi32>
    %15 = arith.extui %14 : vector<16x32xi1> to vector<16x32xi32>
    %16 = arith.sitofp %15 : vector<16x32xi32> to vector<16x32xf32>
    %c0_5 = arith.constant 0 : index
    %c0_6 = arith.constant 0 : index
    %17 = vector.load %arg3[%c0_5, %c0_6] : memref<32x1xf32, #tpu.memory_space<vmem>>, vector<32x1xf32>
    %c0_7 = arith.constant 0 : index
    %c0_8 = arith.constant 0 : index
    %18 = vector.load %arg4[%c0_7, %c0_8] : memref<16x4xf32, #tpu.memory_space<vmem>>, vector<16x4xf32>
    %c0_9 = arith.constant 0 : index
    %c0_10 = arith.constant 0 : index
    %19 = vector.load %arg5[%c0_9, %c0_10] : memref<4x8xf32, #tpu.memory_space<vmem>>, vector<4x8xf32>
    %c0_11 = arith.constant 0 : index
    %c0_12 = arith.constant 0 : index
    %20 = vector.load %arg6[%c0_11, %c0_12] : memref<4x8xf32, #tpu.memory_space<vmem>>, vector<4x8xf32>
    %c0_13 = arith.constant 0 : index
    %c0_14 = arith.constant 0 : index
    %21 = vector.load %arg7[%c0_13, %c0_14] : memref<1x8xf32, #tpu.memory_space<vmem>>, vector<1x8xf32>
    %c0_15 = arith.constant 0 : index
    %c0_16 = arith.constant 0 : index
    %22 = vector.load %arg8[%c0_15, %c0_16] : memref<1x8xf32, #tpu.memory_space<vmem>>, vector<1x8xf32>
    %c0_17 = arith.constant 0 : index
    %c0_18 = arith.constant 0 : index
    %23 = vector.load %arg9[%c0_17, %c0_18] : memref<8x32xf32, #tpu.memory_space<vmem>>, vector<8x32xf32>
    %c0_19 = arith.constant 0 : index
    %c0_20 = arith.constant 0 : index
    %24 = vector.load %arg10[%c0_19, %c0_20] : memref<1x32xf32, #tpu.memory_space<vmem>>, vector<1x32xf32>
    %c0_21 = arith.constant 0 : index
    %c0_22 = arith.constant 0 : index
    %25 = vector.load %arg11[%c0_21, %c0_22] : memref<4x32xf32, #tpu.memory_space<vmem>>, vector<4x32xf32>
    %cst = arith.constant dense<0.000000e+00> : vector<32x4xf32>
    %26 = tpu.matmul %6, %18, %cst {dimension_numbers = #tpu.dot_dimension_numbers<[1], [0], [0], [1], [0, 0, 1, 1], [], []>} : vector<32x16xf32>, vector<16x4xf32>, vector<32x4xf32> -> vector<32x4xf32>
    %cst_23 = arith.constant dense<0.000000e+00> : vector<32x4xf32>
    %27 = tpu.matmul %11, %18, %cst_23 {dimension_numbers = #tpu.dot_dimension_numbers<[1], [0], [0], [1], [0, 0, 1, 1], [], []>} : vector<32x16xf32>, vector<16x4xf32>, vector<32x4xf32> -> vector<32x4xf32>
    %cst_24 = arith.constant dense<0.000000e+00> : vector<32x8xf32>
    %28 = tpu.matmul %27, %19, %cst_24 {dimension_numbers = #tpu.dot_dimension_numbers<[1], [0], [0], [1], [0, 0, 1, 1], [], []>} : vector<32x4xf32>, vector<4x8xf32>, vector<32x8xf32> -> vector<32x8xf32>
    %cst_25 = arith.constant dense<0.000000e+00> : vector<32x8xf32>
    %29 = tpu.matmul %26, %20, %cst_25 {dimension_numbers = #tpu.dot_dimension_numbers<[1], [0], [0], [1], [0, 0, 1, 1], [], []>} : vector<32x4xf32>, vector<4x8xf32>, vector<32x8xf32> -> vector<32x8xf32>
    %30 = arith.addf %28, %29 : vector<32x8xf32>
    %31 = vector.broadcast %17 : vector<32x1xf32> to vector<32x8xf32>
    %32 = vector.broadcast %21 : vector<1x8xf32> to vector<32x8xf32>
    %33 = arith.mulf %31, %32 : vector<32x8xf32>
    %34 = arith.addf %30, %33 : vector<32x8xf32>
    %35 = vector.broadcast %22 : vector<1x8xf32> to vector<32x8xf32>
    %36 = arith.addf %34, %35 : vector<32x8xf32>
    %37 = arith.negf %36 : vector<32x8xf32>
    %38 = math.exp %37 : vector<32x8xf32>
    %cst_26 = arith.constant 1.000000e+00 : f32
    %39 = vector.broadcast %cst_26 : f32 to vector<32x8xf32>
    %40 = arith.addf %39, %38 : vector<32x8xf32>
    %41 = arith.divf %39, %40 : vector<32x8xf32>
    %42 = arith.mulf %36, %41 : vector<32x8xf32>
    %cst_27 = arith.constant dense<0.000000e+00> : vector<32x32xf32>
    %43 = tpu.matmul %42, %23, %cst_27 {dimension_numbers = #tpu.dot_dimension_numbers<[1], [0], [0], [1], [0, 0, 1, 1], [], []>} : vector<32x8xf32>, vector<8x32xf32>, vector<32x32xf32> -> vector<32x32xf32>
    %44 = vector.broadcast %24 : vector<1x32xf32> to vector<32x32xf32>
    %45 = arith.addf %43, %44 : vector<32x32xf32>
    %cst_28 = arith.constant dense<0.000000e+00> : vector<16x32xf32>
    %46 = tpu.matmul %16, %45, %cst_28 {dimension_numbers = #tpu.dot_dimension_numbers<[1], [0], [0], [1], [0, 0, 1, 1], [], []>} : vector<16x32xf32>, vector<32x32xf32>, vector<16x32xf32> -> vector<16x32xf32>
    %cst_29 = arith.constant dense<0.000000e+00> : vector<16x32xf32>
    %47 = tpu.matmul %18, %25, %cst_29 {dimension_numbers = #tpu.dot_dimension_numbers<[1], [0], [0], [1], [0, 0, 1, 1], [], []>} : vector<16x4xf32>, vector<4x32xf32>, vector<16x32xf32> -> vector<16x32xf32>
    %48 = arith.addf %46, %47 : vector<16x32xf32>
    %49 = math.tanh %48 : vector<16x32xf32>
    %c0_30 = arith.constant 0 : index
    %c0_31 = arith.constant 0 : index
    %50 = vector.load %arg12[%c0_30, %c0_31] : memref<32x64xf32, #tpu.memory_space<vmem>>, vector<32x64xf32>
    %c0_32 = arith.constant 0 : index
    %c0_33 = arith.constant 0 : index
    %51 = vector.load %arg13[%c0_32, %c0_33] : memref<32x64xf32, #tpu.memory_space<vmem>>, vector<32x64xf32>
    %c0_34 = arith.constant 0 : index
    %c0_35 = arith.constant 0 : index
    %52 = vector.load %arg14[%c0_34, %c0_35] : memref<1x64xf32, #tpu.memory_space<vmem>>, vector<1x64xf32>
    %c0_36 = arith.constant 0 : index
    %c0_37 = arith.constant 0 : index
    %53 = vector.load %arg15[%c0_36, %c0_37] : memref<1x64xf32, #tpu.memory_space<vmem>>, vector<1x64xf32>
    %c0_38 = arith.constant 0 : index
    %c0_39 = arith.constant 0 : index
    %54 = vector.load %arg16[%c0_38, %c0_39] : memref<64x32xf32, #tpu.memory_space<vmem>>, vector<64x32xf32>
    %c0_40 = arith.constant 0 : index
    %c0_41 = arith.constant 0 : index
    %55 = vector.load %arg17[%c0_40, %c0_41] : memref<1x32xf32, #tpu.memory_space<vmem>>, vector<1x32xf32>
    %c0_42 = arith.constant 0 : index
    %c0_43 = arith.constant 0 : index
    %56 = vector.load %arg18[%c0_42, %c0_43] : memref<32x32xf32, #tpu.memory_space<vmem>>, vector<32x32xf32>
    %cst_44 = arith.constant dense<0.000000e+00> : vector<32x32xf32>
    %57 = tpu.matmul %6, %49, %cst_44 {dimension_numbers = #tpu.dot_dimension_numbers<[1], [0], [0], [1], [0, 0, 1, 1], [], []>} : vector<32x16xf32>, vector<16x32xf32>, vector<32x32xf32> -> vector<32x32xf32>
    %cst_45 = arith.constant dense<0.000000e+00> : vector<32x32xf32>
    %58 = tpu.matmul %11, %49, %cst_45 {dimension_numbers = #tpu.dot_dimension_numbers<[1], [0], [0], [1], [0, 0, 1, 1], [], []>} : vector<32x16xf32>, vector<16x32xf32>, vector<32x32xf32> -> vector<32x32xf32>
    %cst_46 = arith.constant dense<0.000000e+00> : vector<32x64xf32>
    %59 = tpu.matmul %58, %50, %cst_46 {dimension_numbers = #tpu.dot_dimension_numbers<[1], [0], [0], [1], [0, 0, 1, 1], [], []>} : vector<32x32xf32>, vector<32x64xf32>, vector<32x64xf32> -> vector<32x64xf32>
    %cst_47 = arith.constant dense<0.000000e+00> : vector<32x64xf32>
    %60 = tpu.matmul %57, %51, %cst_47 {dimension_numbers = #tpu.dot_dimension_numbers<[1], [0], [0], [1], [0, 0, 1, 1], [], []>} : vector<32x32xf32>, vector<32x64xf32>, vector<32x64xf32> -> vector<32x64xf32>
    %61 = arith.addf %59, %60 : vector<32x64xf32>
    %62 = vector.broadcast %17 : vector<32x1xf32> to vector<32x64xf32>
    %63 = vector.broadcast %52 : vector<1x64xf32> to vector<32x64xf32>
    %64 = arith.mulf %62, %63 : vector<32x64xf32>
    %65 = arith.addf %61, %64 : vector<32x64xf32>
    %66 = vector.broadcast %53 : vector<1x64xf32> to vector<32x64xf32>
    %67 = arith.addf %65, %66 : vector<32x64xf32>
    %68 = arith.negf %67 : vector<32x64xf32>
    %69 = math.exp %68 : vector<32x64xf32>
    %cst_48 = arith.constant 1.000000e+00 : f32
    %70 = vector.broadcast %cst_48 : f32 to vector<32x64xf32>
    %71 = arith.addf %70, %69 : vector<32x64xf32>
    %72 = arith.divf %70, %71 : vector<32x64xf32>
    %73 = arith.mulf %67, %72 : vector<32x64xf32>
    %cst_49 = arith.constant dense<0.000000e+00> : vector<32x32xf32>
    %74 = tpu.matmul %73, %54, %cst_49 {dimension_numbers = #tpu.dot_dimension_numbers<[1], [0], [0], [1], [0, 0, 1, 1], [], []>} : vector<32x64xf32>, vector<64x32xf32>, vector<32x32xf32> -> vector<32x32xf32>
    %75 = vector.broadcast %55 : vector<1x32xf32> to vector<32x32xf32>
    %76 = arith.addf %74, %75 : vector<32x32xf32>
    %cst_50 = arith.constant dense<0.000000e+00> : vector<16x32xf32>
    %77 = tpu.matmul %16, %76, %cst_50 {dimension_numbers = #tpu.dot_dimension_numbers<[1], [0], [0], [1], [0, 0, 1, 1], [], []>} : vector<16x32xf32>, vector<32x32xf32>, vector<16x32xf32> -> vector<16x32xf32>
    %cst_51 = arith.constant dense<0.000000e+00> : vector<16x32xf32>
    %78 = tpu.matmul %49, %56, %cst_51 {dimension_numbers = #tpu.dot_dimension_numbers<[1], [0], [0], [1], [0, 0, 1, 1], [], []>} : vector<16x32xf32>, vector<32x32xf32>, vector<16x32xf32> -> vector<16x32xf32>
    %79 = arith.addf %77, %78 : vector<16x32xf32>
    %80 = math.tanh %79 : vector<16x32xf32>
    %c0_52 = arith.constant 0 : index
    %c0_53 = arith.constant 0 : index
    %81 = vector.load %arg19[%c0_52, %c0_53] : memref<32x128xf32, #tpu.memory_space<vmem>>, vector<32x128xf32>
    %cst_54 = arith.constant dense<0.000000e+00> : vector<16x128xf32>
    %82 = tpu.matmul %80, %81, %cst_54 {dimension_numbers = #tpu.dot_dimension_numbers<[1], [0], [0], [1], [0, 0, 1, 1], [], []>} : vector<16x32xf32>, vector<32x128xf32>, vector<16x128xf32> -> vector<16x128xf32>
    %c0_55 = arith.constant 0 : index
    %c0_56 = arith.constant 0 : index
    %83 = vector.load %arg20[%c0_55, %c0_56] : memref<1x128xf32, #tpu.memory_space<vmem>>, vector<1x128xf32>
    %84 = vector.broadcast %83 : vector<1x128xf32> to vector<16x128xf32>
    %85 = arith.addf %82, %84 : vector<16x128xf32>
    %c0_57 = arith.constant 0 : index
    %c0_58 = arith.constant 0 : index
    %86 = vector.load %arg21[%c0_57, %c0_58] : memref<16x128xf32, #tpu.memory_space<vmem>>, vector<16x128xf32>
    tpu.vector_store %arg21[%c0_57, %c0_58], %85 {strides = array<i32>} : memref<16x128xf32, #tpu.memory_space<vmem>>, vector<16x128xf32>,
    return
  }
}

</mosaic_0001>

<llo_original>
// kernel: tpu_custom_call.1
$region0: #{tpu_custom_call.1}
  #allocation0 [shape = 'u32[]', space=smem, size = 0x4, offset = 0x4, fixed_abs, tag = 'smem constant byte address 0x4 - core index']
  #allocation1 [shape = 'u32[72,128]{1,0:T(1,128)}', space=vmem, size = 0x9000, scoped, tag = 'internal scratch']
  %s0 = inlined_call_operand.vmem [shape: s32[32,1], index: 0, kind: input, shape index: {}]
  %s1 = inlined_call_operand.vmem [shape: s32[32,1], index: 1, kind: input, shape index: {}]
  %s2 = inlined_call_operand.vmem [shape: s32[1,32], index: 2, kind: input, shape index: {}]
  %s3 = inlined_call_operand.vmem [shape: f32[32,1], index: 3, kind: input, shape index: {}]
  %s4 = inlined_call_operand.vmem [shape: f32[16,4], index: 4, kind: input, shape index: {}]
  %s5 = inlined_call_operand.vmem [shape: f32[4,8], index: 5, kind: input, shape index: {}]
  %s6 = inlined_call_operand.vmem [shape: f32[4,8], index: 6, kind: input, shape index: {}]
  %s7 = inlined_call_operand.vmem [shape: f32[1,8], index: 7, kind: input, shape index: {}]
  %s8 = inlined_call_operand.vmem [shape: f32[1,8], index: 8, kind: input, shape index: {}]
  %s9 = inlined_call_operand.vmem [shape: f32[8,32], index: 9, kind: input, shape index: {}]
  %s10 = inlined_call_operand.vmem [shape: f32[1,32], index: 10, kind: input, shape index: {}]
  %s11 = inlined_call_operand.vmem [shape: f32[4,32], index: 11, kind: input, shape index: {}]
  %s12 = inlined_call_operand.vmem [shape: f32[32,64], index: 12, kind: input, shape index: {}]
  %s13 = inlined_call_operand.vmem [shape: f32[32,64], index: 13, kind: input, shape index: {}]
  %s14 = inlined_call_operand.vmem [shape: f32[1,64], index: 14, kind: input, shape index: {}]
  %s15 = inlined_call_operand.vmem [shape: f32[1,64], index: 15, kind: input, shape index: {}]
  %s16 = inlined_call_operand.vmem [shape: f32[64,32], index: 16, kind: input, shape index: {}]
  %s17 = inlined_call_operand.vmem [shape: f32[1,32], index: 17, kind: input, shape index: {}]
  %s18 = inlined_call_operand.vmem [shape: f32[32,32], index: 18, kind: input, shape index: {}]
  %s19 = inlined_call_operand.vmem [shape: f32[32,128], index: 19, kind: input, shape index: {}]
  %s20 = inlined_call_operand.vmem [shape: f32[1,128], index: 20, kind: input, shape index: {}]
  %s21 = inlined_call_operand.hbm [shape: f32[16,128], index: 21, kind: output, shape index: {}]
  %s22 = sld [smem:[#allocation0]]
  $region94: #{tpu_custom_call.1} parent=0
    _
  %s24 = ssub.s32 1, %s22
  %s25 = scalar_select 0, %s24, %s22
  $region1: #{tpu_custom_call.1} parent=0
    #allocation2 [shape = 'u8[8192]{0}', space=vmem, size = 0x2000, scoped, tag = 'output window, operand 0, single buffered']
    #allocation3 [shape = 's32[1]{0}', space=sflag, size = 0x4, scoped, tag = 'scoped memory for tpu_custom_call.1']
    %26 = vsyncpa [#allocation3], 0
    // Predicated region
    $region2: #{tpu_custom_call.1} parent=1 // pred_check
      _
    $region3: #{tpu_custom_call.1} parent=1 // pred_check_branch
      %28 = sbr.rel (0) target = $region5
    $region4: #{tpu_custom_call.1} parent=1 // pred_region
      _
    $region5: #{tpu_custom_call.1} parent=1 // pred_fallthru
      _
    // Predicated region
    $region6: #{tpu_custom_call.1} parent=1 // pred_check
      _
    $region7: #{tpu_custom_call.1} parent=1 // pred_check_branch
      %30 = sbr.rel (0) target = $region9
    $region8: #{tpu_custom_call.1} parent=1 // pred_region
      _
    $region9: #{tpu_custom_call.1} parent=1 // pred_fallthru
      _
    // Predicated region
    $region10: #{tpu_custom_call.1} parent=1 // pred_check
      _
    $region11: #{tpu_custom_call.1} parent=1 // pred_check_branch
      %32 = sbr.rel (0) target = $region13
    $region12: #{tpu_custom_call.1} parent=1 // pred_region
      _
    $region13: #{tpu_custom_call.1} parent=1 // pred_fallthru
      _
    // Predicated region
    $region14: #{tpu_custom_call.1} parent=1 // pred_check
      _
    $region15: #{tpu_custom_call.1} parent=1 // pred_check_branch
      %34 = sbr.rel (0) target = $region17
    $region16: #{tpu_custom_call.1} parent=1 // pred_region
      _
    $region17: #{tpu_custom_call.1} parent=1 // pred_fallthru
      _
    // Predicated region
    $region18: #{tpu_custom_call.1} parent=1 // pred_check
      _
    $region19: #{tpu_custom_call.1} parent=1 // pred_check_branch
      %36 = sbr.rel (0) target = $region21
    $region20: #{tpu_custom_call.1} parent=1 // pred_region
      _
    $region21: #{tpu_custom_call.1} parent=1 // pred_fallthru
      _
    // Predicated region
    $region22: #{tpu_custom_call.1} parent=1 // pred_check
      _
    $region23: #{tpu_custom_call.1} parent=1 // pred_check_branch
      %38 = sbr.rel (0) target = $region25
    $region24: #{tpu_custom_call.1} parent=1 // pred_region
      _
    $region25: #{tpu_custom_call.1} parent=1 // pred_fallthru
      _
    // Predicated region
    $region26: #{tpu_custom_call.1} parent=1 // pred_check
      _
    $region27: #{tpu_custom_call.1} parent=1 // pred_check_branch
      %40 = sbr.rel (0) target = $region29
    $region28: #{tpu_custom_call.1} parent=1 // pred_region
      _
    $region29: #{tpu_custom_call.1} parent=1 // pred_fallthru
      _
    // Predicated region
    $region30: #{tpu_custom_call.1} parent=1 // pred_check
      _
    $region31: #{tpu_custom_call.1} parent=1 // pred_check_branch
      %42 = sbr.rel (0) target = $region33
    $region32: #{tpu_custom_call.1} parent=1 // pred_region
      _
    $region33: #{tpu_custom_call.1} parent=1 // pred_fallthru
      _
    // Predicated region
    $region34: #{tpu_custom_call.1} parent=1 // pred_check
      _
    $region35: #{tpu_custom_call.1} parent=1 // pred_check_branch
      %44 = sbr.rel (0) target = $region37
    $region36: #{tpu_custom_call.1} parent=1 // pred_region
      _
    $region37: #{tpu_custom_call.1} parent=1 // pred_fallthru
      _
    // Predicated region
    $region38: #{tpu_custom_call.1} parent=1 // pred_check
      _
    $region39: #{tpu_custom_call.1} parent=1 // pred_check_branch
      %46 = sbr.rel (0) target = $region41
    $region40: #{tpu_custom_call.1} parent=1 // pred_region
      _
    $region41: #{tpu_custom_call.1} parent=1 // pred_fallthru
      _
    // Predicated region
    $region42: #{tpu_custom_call.1} parent=1 // pred_check
      _
    $region43: #{tpu_custom_call.1} parent=1 // pred_check_branch
      %48 = sbr.rel (0) target = $region45
    $region44: #{tpu_custom_call.1} parent=1 // pred_region
      _
    $region45: #{tpu_custom_call.1} parent=1 // pred_fallthru
      _
    // Predicated region
    $region46: #{tpu_custom_call.1} parent=1 // pred_check
      _
    $region47: #{tpu_custom_call.1} parent=1 // pred_check_branch
      %50 = sbr.rel (0) target = $region49
    $region48: #{tpu_custom_call.1} parent=1 // pred_region
      _
    $region49: #{tpu_custom_call.1} parent=1 // pred_fallthru
      _
    // Predicated region
    $region50: #{tpu_custom_call.1} parent=1 // pred_check
      _
    $region51: #{tpu_custom_call.1} parent=1 // pred_check_branch
      %52 = sbr.rel (0) target = $region53
    $region52: #{tpu_custom_call.1} parent=1 // pred_region
      _
    $region53: #{tpu_custom_call.1} parent=1 // pred_fallthru
      _
    // Predicated region
    $region54: #{tpu_custom_call.1} parent=1 // pred_check
      _
    $region55: #{tpu_custom_call.1} parent=1 // pred_check_branch
      %54 = sbr.rel (0) target = $region57
    $region56: #{tpu_custom_call.1} parent=1 // pred_region
      _
    $region57: #{tpu_custom_call.1} parent=1 // pred_fallthru
      _
    // Predicated region
    $region58: #{tpu_custom_call.1} parent=1 // pred_check
      _
    $region59: #{tpu_custom_call.1} parent=1 // pred_check_branch
      %56 = sbr.rel (0) target = $region61
    $region60: #{tpu_custom_call.1} parent=1 // pred_region
      _
    $region61: #{tpu_custom_call.1} parent=1 // pred_fallthru
      _
    // Predicated region
    $region62: #{tpu_custom_call.1} parent=1 // pred_check
      _
    $region63: #{tpu_custom_call.1} parent=1 // pred_check_branch
      %58 = sbr.rel (0) target = $region65
    $region64: #{tpu_custom_call.1} parent=1 // pred_region
      _
    $region65: #{tpu_custom_call.1} parent=1 // pred_fallthru
      _
    // Predicated region
    $region66: #{tpu_custom_call.1} parent=1 // pred_check
      _
    $region67: #{tpu_custom_call.1} parent=1 // pred_check_branch
      %60 = sbr.rel (0) target = $region69
    $region68: #{tpu_custom_call.1} parent=1 // pred_region
      _
    $region69: #{tpu_custom_call.1} parent=1 // pred_fallthru
      _
    // Predicated region
    $region70: #{tpu_custom_call.1} parent=1 // pred_check
      _
    $region71: #{tpu_custom_call.1} parent=1 // pred_check_branch
      %62 = sbr.rel (0) target = $region73
    $region72: #{tpu_custom_call.1} parent=1 // pred_region
      _
    $region73: #{tpu_custom_call.1} parent=1 // pred_fallthru
      _
    // Predicated region
    $region74: #{tpu_custom_call.1} parent=1 // pred_check
      _
    $region75: #{tpu_custom_call.1} parent=1 // pred_check_branch
      %64 = sbr.rel (0) target = $region77
    $region76: #{tpu_custom_call.1} parent=1 // pred_region
      _
    $region77: #{tpu_custom_call.1} parent=1 // pred_fallthru
      _
    // Predicated region
    $region78: #{tpu_custom_call.1} parent=1 // pred_check
      _
    $region79: #{tpu_custom_call.1} parent=1 // pred_check_branch
      %66 = sbr.rel (0) target = $region81
    $region80: #{tpu_custom_call.1} parent=1 // pred_region
      _
    $region81: #{tpu_custom_call.1} parent=1 // pred_fallthru
      _
    // Predicated region
    $region82: #{tpu_custom_call.1} parent=1 // pred_check
      _
    $region83: #{tpu_custom_call.1} parent=1 // pred_check_branch
      %68 = sbr.rel (0) target = $region85
    $region84: #{tpu_custom_call.1} parent=1 // pred_region
      _
    $region85: #{tpu_custom_call.1} parent=1 // pred_fallthru
      _
    %v69 = vlaneseq
    %v70 = vand.u32 %v69, 127
    %v71 = vlaneseq
    %v72 = vshrl.u32 %v71, 7
    %v73 = vadd.s32 %v72, 8
    %v74 = vld [vmem:[%s0] sm:$0xff]
    %v75 = vld [vmem:[%s0 + $0x8] sm:$0xff]
    %v76 = vld [vmem:[%s0 + $0x10] sm:$0xff]
    %v77 = vld [vmem:[%s0 + $0x18] sm:$0xff]
    %78 = vset.pattern.permute.xlu0 0
    %79 = vperm.xlu0 %78, %v74
    %v80 = vpop.permute.xlu0 %79
    %81 = vset.pattern.permute.xlu0 0
    %82 = vperm.xlu0 %81, %v75
    %v83 = vpop.permute.xlu0 %82
    %84 = vset.pattern.permute.xlu0 0
    %85 = vperm.xlu0 %84, %v76
    %v86 = vpop.permute.xlu0 %85
    %87 = vset.pattern.permute.xlu0 0
    %88 = vperm.xlu0 %87, %v77
    %v89 = vpop.permute.xlu0 %88
    %vm90 = vcmp.eq.s32.totalorder %v70, %v80
    %vm91 = vcmp.eq.s32.totalorder %v70, %v83
    %vm92 = vcmp.eq.s32.totalorder %v70, %v86
    %vm93 = vcmp.eq.s32.totalorder %v70, %v89
    %v94 = vsel %vm90, 1, 0
    %v95 = vsel %vm91, 1, 0
    %v96 = vsel %vm92, 1, 0
    %v97 = vsel %vm93, 1, 0
    %v98 = vcvt.s32.f32 %v94
    %v99 = vcvt.s32.f32 %v95
    %v100 = vcvt.s32.f32 %v96
    %v101 = vcvt.s32.f32 %v97
    %v102 = vld [vmem:[%s1] sm:$0xff]
    %v103 = vld [vmem:[%s1 + $0x8] sm:$0xff]
    %v104 = vld [vmem:[%s1 + $0x10] sm:$0xff]
    %v105 = vld [vmem:[%s1 + $0x18] sm:$0xff]
    %106 = vset.pattern.permute.xlu0 0
    %107 = vperm.xlu0 %106, %v102
    %v108 = vpop.permute.xlu0 %107
    %109 = vset.pattern.permute.xlu0 0
    %110 = vperm.xlu0 %109, %v103
    %v111 = vpop.permute.xlu0 %110
    %112 = vset.pattern.permute.xlu0 0
    %113 = vperm.xlu0 %112, %v104
    %v114 = vpop.permute.xlu0 %113
    %115 = vset.pattern.permute.xlu0 0
    %116 = vperm.xlu0 %115, %v105
    %v117 = vpop.permute.xlu0 %116
    %vm118 = vcmp.eq.s32.totalorder %v70, %v108
    %vm119 = vcmp.eq.s32.totalorder %v70, %v111
    %vm120 = vcmp.eq.s32.totalorder %v70, %v114
    %vm121 = vcmp.eq.s32.totalorder %v70, %v117
    %v122 = vsel %vm118, 1, 0
    %v123 = vsel %vm119, 1, 0
    %v124 = vsel %vm120, 1, 0
    %v125 = vsel %vm121, 1, 0
    %v126 = vcvt.s32.f32 %v122
    %v127 = vcvt.s32.f32 %v123
    %v128 = vcvt.s32.f32 %v124
    %v129 = vcvt.s32.f32 %v125
    %v130 = vld [vmem:[%s2] sm:$0x1]
    %v131 = vperm.slane %v130, 0
    %vm132 = vcmp.eq.s32.totalorder %v72, %v131
    %vm133 = vcmp.eq.s32.totalorder %v73, %v131
    %v134 = vsel %vm132, 1, 0
    %v135 = vsel %vm133, 1, 0
    %v136 = vcvt.s32.f32 %v134
    %v137 = vcvt.s32.f32 %v135
    %v138 = vld [vmem:[%s3] sm:$0xff]
    %v139 = vld [vmem:[%s3 + $0x8] sm:$0xff]
    %v140 = vld [vmem:[%s3 + $0x10] sm:$0xff]
    %v141 = vld [vmem:[%s3 + $0x18] sm:$0xff]
    %v142 = vld [vmem:[%s4] sm:$0xff]
    %v143 = vld [vmem:[%s4 + $0x8] sm:$0xff]
    %v144 = vld [vmem:[%s5] sm:$0xf]
    %v145 = vld [vmem:[%s6] sm:$0xf]
    %v146 = vld [vmem:[%s7] sm:$0x1]
    %v147 = vld [vmem:[%s8] sm:$0x1]
    %v148 = vld [vmem:[%s9] sm:$0xff]
    %v149 = vld [vmem:[%s10] sm:$0x1]
    %v150 = vld [vmem:[%s11] sm:$0xf]
    %vm151 = vcmask 130048
    %v153 = vsel %vm151, %v98, 0
    %v156 = vsel %vm151, %v99, 0
    %v159 = vsel %vm151, %v100, 0
    %v162 = vsel %vm151, %v101, 0
    %164 = vmatpush.msra.mxu0 0.0
    %165 = vmatpush.msra.mxu0 0.0
    %166 = vmatpush.msra.mxu0 0.0
    %167 = vmatpush.msra.mxu0 0.0
    %168 = vmatpush.msra.mxu0 0.0
    %169 = vmatpush.msra.mxu0 0.0
    %170 = vmatpush.msra.mxu0 0.0
    %171 = vmatpush.msra.mxu0 0.0
    %172 = vmatpush.msra.mxu0 0.0
    %173 = vmatpush.msra.mxu0 0.0
    %174 = vmatpush.msra.mxu0 0.0
    %175 = vmatpush.msra.mxu0 0.0
    %176 = vmatpush.msra.mxu0 0.0
    %177 = vmatpush.msra.mxu0 0.0
    %178 = vmatpush.msra.mxu0 %v143
    %179 = vmatpush.msra.mxu0 %v142
    %180 = vmatmul.f32.gmra.mxu0 %v153
    %v181 = vpop.f32.mrf.mxu0
    %v182 = vadd.f32 0.0, %v181
    %183 = vmatmul.f32.gmra.mxu0 %v156
    %v184 = vpop.f32.mrf.mxu0
    %v185 = vadd.f32 0.0, %v184
    %186 = vmatmul.f32.gmra.mxu0 %v159
    %v187 = vpop.f32.mrf.mxu0
    %v188 = vadd.f32 0.0, %v187
    %189 = vmatmul.f32.gmra.mxu0 %v162
    %v190 = vpop.f32.mrf.mxu0
    %v191 = vadd.f32 0.0, %v190
    %192 = vdwg.mxu0
    %v194 = vsel %vm151, %v126, 0
    %v197 = vsel %vm151, %v127, 0
    %v200 = vsel %vm151, %v128, 0
    %v203 = vsel %vm151, %v129, 0
    %205 = vmatpush.msra.mxu0 0.0
    %206 = vmatpush.msra.mxu0 0.0
    %207 = vmatpush.msra.mxu0 0.0
    %208 = vmatpush.msra.mxu0 0.0
    %209 = vmatpush.msra.mxu0 0.0
    %210 = vmatpush.msra.mxu0 0.0
    %211 = vmatpush.msra.mxu0 0.0
    %212 = vmatpush.msra.mxu0 0.0
    %213 = vmatpush.msra.mxu0 0.0
    %214 = vmatpush.msra.mxu0 0.0
    %215 = vmatpush.msra.mxu0 0.0
    %216 = vmatpush.msra.mxu0 0.0
    %217 = vmatpush.msra.mxu0 0.0
    %218 = vmatpush.msra.mxu0 0.0
    %219 = vmatpush.msra.mxu0 %v143
    %220 = vmatpush.msra.mxu0 %v142
    %221 = vmatmul.f32.gmra.mxu0 %v194
    %v222 = vpop.f32.mrf.mxu0
    %v223 = vadd.f32 0.0, %v222
    %224 = vmatmul.f32.gmra.mxu0 %v197
    %v225 = vpop.f32.mrf.mxu0
    %v226 = vadd.f32 0.0, %v225
    %227 = vmatmul.f32.gmra.mxu0 %v200
    %v228 = vpop.f32.mrf.mxu0
    %v229 = vadd.f32 0.0, %v228
    %230 = vmatmul.f32.gmra.mxu0 %v203
    %v231 = vpop.f32.mrf.mxu0
    %v232 = vadd.f32 0.0, %v231
    %233 = vdwg.mxu0
    %vm234 = vcmask 31744
    %v236 = vsel %vm234, %v182, 0
    %v239 = vsel %vm234, %v185, 0
    %v242 = vsel %vm234, %v188, 0
    %v245 = vsel %vm234, %v191, 0
    %vm247 = vcmask 1043456
    %v249 = vsel %vm247, %v145, 0
    %251 = vmatpush.msra.mxu0 0.0
    %252 = vmatpush.msra.mxu0 0.0
    %253 = vmatpush.msra.mxu0 0.0
    %254 = vmatpush.msra.mxu0 0.0
    %255 = vmatpush.msra.mxu0 0.0
    %256 = vmatpush.msra.mxu0 0.0
    %257 = vmatpush.msra.mxu0 0.0
    %258 = vmatpush.msra.mxu0 0.0
    %259 = vmatpush.msra.mxu0 0.0
    %260 = vmatpush.msra.mxu0 0.0
    %261 = vmatpush.msra.mxu0 0.0
    %262 = vmatpush.msra.mxu0 0.0
    %263 = vmatpush.msra.mxu0 0.0
    %264 = vmatpush.msra.mxu0 0.0
    %265 = vmatpush.msra.mxu0 0.0
    %266 = vmatpush.msra.mxu0 %v249
    %267 = vmatmul.f32.gmra.mxu0 %v236
    %v268 = vpop.f32.mrf.mxu0
    %v269 = vadd.f32 0.0, %v268
    %270 = vmatmul.f32.gmra.mxu0 %v239
    %v271 = vpop.f32.mrf.mxu0
    %v272 = vadd.f32 0.0, %v271
    %273 = vmatmul.f32.gmra.mxu0 %v242
    %v274 = vpop.f32.mrf.mxu0
    %v275 = vadd.f32 0.0, %v274
    %276 = vmatmul.f32.gmra.mxu0 %v245
    %v277 = vpop.f32.mrf.mxu0
    %v278 = vadd.f32 0.0, %v277
    %279 = vdwg.mxu0
    %v281 = vsel %vm234, %v223, 0
    %v284 = vsel %vm234, %v226, 0
    %v287 = vsel %vm234, %v229, 0
    %v290 = vsel %vm234, %v232, 0
    %v293 = vsel %vm247, %v144, 0
    %295 = vmatpush.msra.mxu0 0.0
    %296 = vmatpush.msra.mxu0 0.0
    %297 = vmatpush.msra.mxu0 0.0
    %298 = vmatpush.msra.mxu0 0.0
    %299 = vmatpush.msra.mxu0 0.0
    %300 = vmatpush.msra.mxu0 0.0
    %301 = vmatpush.msra.mxu0 0.0
    %302 = vmatpush.msra.mxu0 0.0
    %303 = vmatpush.msra.mxu0 0.0
    %304 = vmatpush.msra.mxu0 0.0
    %305 = vmatpush.msra.mxu0 0.0
    %306 = vmatpush.msra.mxu0 0.0
    %307 = vmatpush.msra.mxu0 0.0
    %308 = vmatpush.msra.mxu0 0.0
    %309 = vmatpush.msra.mxu0 0.0
    %310 = vmatpush.msra.mxu0 %v293
    %311 = vmatmul.f32.gmra.mxu0 %v281
    %v312 = vpop.f32.mrf.mxu0
    %v313 = vadd.f32 %v269, %v312
    %314 = vmatmul.f32.gmra.mxu0 %v284
    %v315 = vpop.f32.mrf.mxu0
    %v316 = vadd.f32 %v272, %v315
    %317 = vmatmul.f32.gmra.mxu0 %v287
    %v318 = vpop.f32.mrf.mxu0
    %v319 = vadd.f32 %v275, %v318
    %320 = vmatmul.f32.gmra.mxu0 %v290
    %v321 = vpop.f32.mrf.mxu0
    %v322 = vadd.f32 %v278, %v321
    %323 = vdwg.mxu0
    %325 = vset.pattern.permute.xlu0 0
    %326 = vperm.xlu0 %325, %v138
    %v327 = vpop.permute.xlu0 %326
    %330 = vset.pattern.permute.xlu0 0
    %331 = vperm.xlu0 %330, %v139
    %v332 = vpop.permute.xlu0 %331
    %335 = vset.pattern.permute.xlu0 0
    %336 = vperm.xlu0 %335, %v140
    %v337 = vpop.permute.xlu0 %336
    %340 = vset.pattern.permute.xlu0 0
    %341 = vperm.xlu0 %340, %v141
    %v342 = vpop.permute.xlu0 %341
    %v345 = vperm.slane %v146, 0
    %v347 = vmul.f32 %v327, %v345
    %v348 = vmul.f32 %v332, %v345
    %v349 = vmul.f32 %v337, %v345
    %v350 = vmul.f32 %v342, %v345
    %v351 = vadd.f32 %v313, %v347
    %v352 = vadd.f32 %v316, %v348
    %v353 = vadd.f32 %v319, %v349
    %v354 = vadd.f32 %v322, %v350
    %v356 = vperm.slane %v147, 0
    %v358 = vadd.f32 %v351, %v356
    %v359 = vadd.f32 %v352, %v356
    %v360 = vadd.f32 %v353, %v356
    %v361 = vadd.f32 %v354, %v356
    %v362 = vxor.u32 %v358, 2147483648
    %v363 = vxor.u32 %v359, 2147483648
    %v364 = vxor.u32 %v360, 2147483648
    %v365 = vxor.u32 %v361, 2147483648
    %v366 = vmul.f32 %v362, 1.442695
    %v367 = vpow.pop %v366
    %v368 = vmul.f32 %v363, 1.442695
    %v369 = vpow.pop %v368
    %v370 = vmul.f32 %v364, 1.442695
    %v371 = vpow.pop %v370
    %v372 = vmul.f32 %v365, 1.442695
    %v373 = vpow.pop %v372
    %v374 = vadd.f32 %v367, 1.0
    %v375 = vadd.f32 %v369, 1.0
    %v376 = vadd.f32 %v371, 1.0
    %v377 = vadd.f32 %v373, 1.0
    %v378 = vrcp.pop %v374
    %v379 = vmul.f32 %v374, %v378
    %v380 = vsub.f32 1.0, %v379
    %v381 = vmul.f32 %v378, %v380
    %v382 = vadd.f32 %v378, %v381
    %vm383 = vweird.f32 %v374
    %vm384 = vweird.f32 %v378
    %vm385 = vmor %vm383, %vm384
    %v386 = vsel %vm385, %v378, %v382
    %v387 = vand.u32 2147483647, %v374
    %vm388 = vcmp.eq.f32.partialorder %v387, 8.507059e+37
    %v389 = vand.u32 %v374, 2147483648
    %v390 = vor.u32 1.1754944e-38, %v389
    %v391 = vsel %vm388, %v390, %v386
    %v392 = vmul.f32 1.0, %v391
    %v393 = vrcp.pop %v375
    %v394 = vmul.f32 %v375, %v393
    %v395 = vsub.f32 1.0, %v394
    %v396 = vmul.f32 %v393, %v395
    %v397 = vadd.f32 %v393, %v396
    %vm398 = vweird.f32 %v375
    %vm399 = vweird.f32 %v393
    %vm400 = vmor %vm398, %vm399
    %v401 = vsel %vm400, %v393, %v397
    %v402 = vand.u32 2147483647, %v375
    %vm403 = vcmp.eq.f32.partialorder %v402, 8.507059e+37
    %v404 = vand.u32 %v375, 2147483648
    %v405 = vor.u32 1.1754944e-38, %v404
    %v406 = vsel %vm403, %v405, %v401
    %v407 = vmul.f32 1.0, %v406
    %v408 = vrcp.pop %v376
    %v409 = vmul.f32 %v376, %v408
    %v410 = vsub.f32 1.0, %v409
    %v411 = vmul.f32 %v408, %v410
    %v412 = vadd.f32 %v408, %v411
    %vm413 = vweird.f32 %v376
    %vm414 = vweird.f32 %v408
    %vm415 = vmor %vm413, %vm414
    %v416 = vsel %vm415, %v408, %v412
    %v417 = vand.u32 2147483647, %v376
    %vm418 = vcmp.eq.f32.partialorder %v417, 8.507059e+37
    %v419 = vand.u32 %v376, 2147483648
    %v420 = vor.u32 1.1754944e-38, %v419
    %v421 = vsel %vm418, %v420, %v416
    %v422 = vmul.f32 1.0, %v421
    %v423 = vrcp.pop %v377
    %v424 = vmul.f32 %v377, %v423
    %v425 = vsub.f32 1.0, %v424
    %v426 = vmul.f32 %v423, %v425
    %v427 = vadd.f32 %v423, %v426
    %vm428 = vweird.f32 %v377
    %vm429 = vweird.f32 %v423
    %vm430 = vmor %vm428, %vm429
    %v431 = vsel %vm430, %v423, %v427
    %v432 = vand.u32 2147483647, %v377
    %vm433 = vcmp.eq.f32.partialorder %v432, 8.507059e+37
    %v434 = vand.u32 %v377, 2147483648
    %v435 = vor.u32 1.1754944e-38, %v434
    %v436 = vsel %vm433, %v435, %v431
    %v437 = vmul.f32 1.0, %v436
    %v438 = vmul.f32 %v358, %v392
    %v439 = vmul.f32 %v359, %v407
    %v440 = vmul.f32 %v360, %v422
    %v441 = vmul.f32 %v361, %v437
    %v443 = vperm.slane %v149, 0
    %vm445 = vcmask 64512
    %v447 = vsel %vm445, %v438, 0
    %v450 = vsel %vm445, %v439, 0
    %v453 = vsel %vm445, %v440, 0
    %v456 = vsel %vm445, %v441, 0
    %458 = vmatpush.msra.mxu0 0.0
    %459 = vmatpush.msra.mxu0 0.0
    %460 = vmatpush.msra.mxu0 0.0
    %461 = vmatpush.msra.mxu0 0.0
    %462 = vmatpush.msra.mxu0 0.0
    %463 = vmatpush.msra.mxu0 0.0
    %464 = vmatpush.msra.mxu0 0.0
    %465 = vmatpush.msra.mxu0 0.0
    %466 = vmatpush.msra.mxu0 0.0
    %467 = vmatpush.msra.mxu0 0.0
    %468 = vmatpush.msra.mxu0 0.0
    %469 = vmatpush.msra.mxu0 0.0
    %470 = vmatpush.msra.mxu0 0.0
    %471 = vmatpush.msra.mxu0 0.0
    %472 = vmatpush.msra.mxu0 0.0
    %473 = vmatpush.msra.mxu0 %v148
    %474 = vmatmul.f32.gmra.mxu0 %v447
    %v475 = vpop.f32.mrf.mxu0
    %v476 = vadd.f32 %v443, %v475
    %477 = vmatmul.f32.gmra.mxu0 %v450
    %v478 = vpop.f32.mrf.mxu0
    %v479 = vadd.f32 %v443, %v478
    %480 = vmatmul.f32.gmra.mxu0 %v453
    %v481 = vpop.f32.mrf.mxu0
    %v482 = vadd.f32 %v443, %v481
    %483 = vmatmul.f32.gmra.mxu0 %v456
    %v484 = vpop.f32.mrf.mxu0
    %v485 = vadd.f32 %v443, %v484
    %486 = vdwg.mxu0
    %v488 = vsel %vm234, %v142, 0
    %v491 = vsel %vm234, %v143, 0
    %v494 = vsel %vm247, %v150, 0
    %496 = vmatpush.msra.mxu0 0.0
    %497 = vmatpush.msra.mxu0 0.0
    %498 = vmatpush.msra.mxu0 0.0
    %499 = vmatpush.msra.mxu0 0.0
    %500 = vmatpush.msra.mxu0 0.0
    %501 = vmatpush.msra.mxu0 0.0
    %502 = vmatpush.msra.mxu0 0.0
    %503 = vmatpush.msra.mxu0 0.0
    %504 = vmatpush.msra.mxu0 0.0
    %505 = vmatpush.msra.mxu0 0.0
    %506 = vmatpush.msra.mxu0 0.0
    %507 = vmatpush.msra.mxu0 0.0
    %508 = vmatpush.msra.mxu0 0.0
    %509 = vmatpush.msra.mxu0 0.0
    %510 = vmatpush.msra.mxu0 0.0
    %511 = vmatpush.msra.mxu0 %v494
    %512 = vmatmul.f32.gmra.mxu0 %v488
    %v513 = vpop.f32.mrf.mxu0
    %v514 = vadd.f32 0.0, %v513
    %515 = vmatmul.f32.gmra.mxu0 %v491
    %v516 = vpop.f32.mrf.mxu0
    %v517 = vadd.f32 0.0, %v516
    %518 = vdwg.mxu0
    %vm519 = vcmask 261120
    %v521 = vsel %vm519, %v136, 0
    %v524 = vsel %vm519, %v137, 0
    %526 = vmatpush.msra.mxu0 0.0
    %527 = vmatpush.msra.mxu0 0.0
    %528 = vmatpush.msra.mxu0 0.0
    %529 = vmatpush.msra.mxu0 0.0
    %530 = vmatpush.msra.mxu0 0.0
    %531 = vmatpush.msra.mxu0 0.0
    %532 = vmatpush.msra.mxu0 0.0
    %533 = vmatpush.msra.mxu0 0.0
    %534 = vmatpush.msra.mxu0 0.0
    %535 = vmatpush.msra.mxu0 0.0
    %536 = vmatpush.msra.mxu0 0.0
    %537 = vmatpush.msra.mxu0 0.0
    %538 = vmatpush.msra.mxu0 %v485
    %539 = vmatpush.msra.mxu0 %v482
    %540 = vmatpush.msra.mxu0 %v479
    %541 = vmatpush.msra.mxu0 %v476
    %542 = vmatmul.f32.gmra.mxu0 %v521
    %v543 = vpop.f32.mrf.mxu0
    %v544 = vadd.f32 %v514, %v543
    %545 = vmatmul.f32.gmra.mxu0 %v524
    %v546 = vpop.f32.mrf.mxu0
    %v547 = vadd.f32 %v517, %v546
    %548 = vdwg.mxu0
    %v549 = vtanh.pop %v544
    %v550 = vtanh.pop %v547
    %v551 = vld [vmem:[%s12] sm:$0xff]
    %v552 = vld [vmem:[%s12 + $0x8] sm:$0xff]
    %v553 = vld [vmem:[%s12 + $0x10] sm:$0xff]
    %v554 = vld [vmem:[%s12 + $0x18] sm:$0xff]
    %v555 = vld [vmem:[%s13] sm:$0xff]
    %v556 = vld [vmem:[%s13 + $0x8] sm:$0xff]
    %v557 = vld [vmem:[%s13 + $0x10] sm:$0xff]
    %v558 = vld [vmem:[%s13 + $0x18] sm:$0xff]
    %v559 = vld [vmem:[%s14] sm:$0x1]
    %v560 = vld [vmem:[%s15] sm:$0x1]
    %v561 = vld [vmem:[%s16] sm:$0xff]
    %v562 = vld [vmem:[%s16 + $0x8] sm:$0xff]
    %v563 = vld [vmem:[%s16 + $0x10] sm:$0xff]
    %v564 = vld [vmem:[%s16 + $0x18] sm:$0xff]
    %v565 = vld [vmem:[%s16 + $0x20] sm:$0xff]
    %v566 = vld [vmem:[%s16 + $0x28] sm:$0xff]
    %v567 = vld [vmem:[%s16 + $0x30] sm:$0xff]
    %v568 = vld [vmem:[%s16 + $0x38] sm:$0xff]
    %v569 = vld [vmem:[%s17] sm:$0x1]
    %v570 = vld [vmem:[%s18] sm:$0xff]
    %v571 = vld [vmem:[%s18 + $0x8] sm:$0xff]
    %v572 = vld [vmem:[%s18 + $0x10] sm:$0xff]
    %v573 = vld [vmem:[%s18 + $0x18] sm:$0xff]
    %574 = vmatpush.msra.mxu0 0.0
    %575 = vmatpush.msra.mxu0 0.0
    %576 = vmatpush.msra.mxu0 0.0
    %577 = vmatpush.msra.mxu0 0.0
    %578 = vmatpush.msra.mxu0 0.0
    %579 = vmatpush.msra.mxu0 0.0
    %580 = vmatpush.msra.mxu0 0.0
    %581 = vmatpush.msra.mxu0 0.0
    %582 = vmatpush.msra.mxu0 0.0
    %583 = vmatpush.msra.mxu0 0.0
    %584 = vmatpush.msra.mxu0 0.0
    %585 = vmatpush.msra.mxu0 0.0
    %586 = vmatpush.msra.mxu0 0.0
    %587 = vmatpush.msra.mxu0 0.0
    %588 = vmatpush.msra.mxu0 %v550
    %589 = vmatpush.msra.mxu0 %v549
    %590 = vmatmul.f32.gmra.mxu0 %v153
    %v591 = vpop.f32.mrf.mxu0
    %v592 = vadd.f32 0.0, %v591
    %593 = vmatmul.f32.gmra.mxu0 %v156
    %v594 = vpop.f32.mrf.mxu0
    %v595 = vadd.f32 0.0, %v594
    %596 = vmatmul.f32.gmra.mxu0 %v159
    %v597 = vpop.f32.mrf.mxu0
    %v598 = vadd.f32 0.0, %v597
    %599 = vmatmul.f32.gmra.mxu0 %v162
    %v600 = vpop.f32.mrf.mxu0
    %v601 = vadd.f32 0.0, %v600
    %602 = vdwg.mxu0
    %603 = vmatpush.msra.mxu0 0.0
    %604 = vmatpush.msra.mxu0 0.0
    %605 = vmatpush.msra.mxu0 0.0
    %606 = vmatpush.msra.mxu0 0.0
    %607 = vmatpush.msra.mxu0 0.0
    %608 = vmatpush.msra.mxu0 0.0
    %609 = vmatpush.msra.mxu0 0.0
    %610 = vmatpush.msra.mxu0 0.0
    %611 = vmatpush.msra.mxu0 0.0
    %612 = vmatpush.msra.mxu0 0.0
    %613 = vmatpush.msra.mxu0 0.0
    %614 = vmatpush.msra.mxu0 0.0
    %615 = vmatpush.msra.mxu0 0.0
    %616 = vmatpush.msra.mxu0 0.0
    %617 = vmatpush.msra.mxu0 %v550
    %618 = vmatpush.msra.mxu0 %v549
    %619 = vmatmul.f32.gmra.mxu0 %v194
    %v620 = vpop.f32.mrf.mxu0
    %v621 = vadd.f32 0.0, %v620
    %622 = vmatmul.f32.gmra.mxu0 %v197
    %v623 = vpop.f32.mrf.mxu0
    %v624 = vadd.f32 0.0, %v623
    %625 = vmatmul.f32.gmra.mxu0 %v200
    %v626 = vpop.f32.mrf.mxu0
    %v627 = vadd.f32 0.0, %v626
    %628 = vmatmul.f32.gmra.mxu0 %v203
    %v629 = vpop.f32.mrf.mxu0
    %v630 = vadd.f32 0.0, %v629
    %631 = vdwg.mxu0
    %v633 = vsel %vm519, %v592, 0
    %v636 = vsel %vm519, %v595, 0
    %v639 = vsel %vm519, %v598, 0
    %v642 = vsel %vm519, %v601, 0
    %644 = vmatpush.msra.mxu0 0.0
    %645 = vmatpush.msra.mxu0 0.0
    %646 = vmatpush.msra.mxu0 0.0
    %647 = vmatpush.msra.mxu0 0.0
    %648 = vmatpush.msra.mxu0 0.0
    %649 = vmatpush.msra.mxu0 0.0
    %650 = vmatpush.msra.mxu0 0.0
    %651 = vmatpush.msra.mxu0 0.0
    %652 = vmatpush.msra.mxu0 0.0
    %653 = vmatpush.msra.mxu0 0.0
    %654 = vmatpush.msra.mxu0 0.0
    %655 = vmatpush.msra.mxu0 0.0
    %656 = vmatpush.msra.mxu0 %v558
    %657 = vmatpush.msra.mxu0 %v557
    %658 = vmatpush.msra.mxu0 %v556
    %659 = vmatpush.msra.mxu0 %v555
    %660 = vmatmul.f32.gmra.mxu0 %v633
    %v661 = vpop.f32.mrf.mxu0
    %v662 = vadd.f32 0.0, %v661
    %663 = vmatmul.f32.gmra.mxu0 %v636
    %v664 = vpop.f32.mrf.mxu0
    %v665 = vadd.f32 0.0, %v664
    %666 = vmatmul.f32.gmra.mxu0 %v639
    %v667 = vpop.f32.mrf.mxu0
    %v668 = vadd.f32 0.0, %v667
    %669 = vmatmul.f32.gmra.mxu0 %v642
    %v670 = vpop.f32.mrf.mxu0
    %v671 = vadd.f32 0.0, %v670
    %672 = vdwg.mxu0
    %v674 = vsel %vm519, %v621, 0
    %v677 = vsel %vm519, %v624, 0
    %v680 = vsel %vm519, %v627, 0
    %v683 = vsel %vm519, %v630, 0
    %685 = vmatpush.msra.mxu0 0.0
    %686 = vmatpush.msra.mxu0 0.0
    %687 = vmatpush.msra.mxu0 0.0
    %688 = vmatpush.msra.mxu0 0.0
    %689 = vmatpush.msra.mxu0 0.0
    %690 = vmatpush.msra.mxu0 0.0
    %691 = vmatpush.msra.mxu0 0.0
    %692 = vmatpush.msra.mxu0 0.0
    %693 = vmatpush.msra.mxu0 0.0
    %694 = vmatpush.msra.mxu0 0.0
    %695 = vmatpush.msra.mxu0 0.0
    %696 = vmatpush.msra.mxu0 0.0
    %697 = vmatpush.msra.mxu0 %v554
    %698 = vmatpush.msra.mxu0 %v553
    %699 = vmatpush.msra.mxu0 %v552
    %700 = vmatpush.msra.mxu0 %v551
    %701 = vmatmul.f32.gmra.mxu0 %v674
    %v702 = vpop.f32.mrf.mxu0
    %v703 = vadd.f32 %v662, %v702
    %704 = vmatmul.f32.gmra.mxu0 %v677
    %v705 = vpop.f32.mrf.mxu0
    %v706 = vadd.f32 %v665, %v705
    %707 = vmatmul.f32.gmra.mxu0 %v680
    %v708 = vpop.f32.mrf.mxu0
    %v709 = vadd.f32 %v668, %v708
    %710 = vmatmul.f32.gmra.mxu0 %v683
    %v711 = vpop.f32.mrf.mxu0
    %v712 = vadd.f32 %v671, %v711
    %713 = vdwg.mxu0
    %v715 = vperm.slane %v559, 0
    %v717 = vmul.f32 %v327, %v715
    %v718 = vmul.f32 %v332, %v715
    %v719 = vmul.f32 %v337, %v715
    %v720 = vmul.f32 %v342, %v715
    %v721 = vadd.f32 %v703, %v717
    %v722 = vadd.f32 %v706, %v718
    %v723 = vadd.f32 %v709, %v719
    %v724 = vadd.f32 %v712, %v720
    %v726 = vperm.slane %v560, 0
    %v728 = vadd.f32 %v721, %v726
    %v729 = vadd.f32 %v722, %v726
    %v730 = vadd.f32 %v723, %v726
    %v731 = vadd.f32 %v724, %v726
    %v732 = vxor.u32 %v728, 2147483648
    %v733 = vxor.u32 %v729, 2147483648
    %v734 = vxor.u32 %v730, 2147483648
    %v735 = vxor.u32 %v731, 2147483648
    %v736 = vmul.f32 %v732, 1.442695
    %v737 = vpow.pop %v736
    %v738 = vmul.f32 %v733, 1.442695
    %v739 = vpow.pop %v738
    %v740 = vmul.f32 %v734, 1.442695
    %v741 = vpow.pop %v740
    %v742 = vmul.f32 %v735, 1.442695
    %v743 = vpow.pop %v742
    %v744 = vadd.f32 %v737, 1.0
    %v745 = vadd.f32 %v739, 1.0
    %v746 = vadd.f32 %v741, 1.0
    %v747 = vadd.f32 %v743, 1.0
    %v748 = vrcp.pop %v744
    %v749 = vmul.f32 %v744, %v748
    %v750 = vsub.f32 1.0, %v749
    %v751 = vmul.f32 %v748, %v750
    %v752 = vadd.f32 %v748, %v751
    %vm753 = vweird.f32 %v744
    %vm754 = vweird.f32 %v748
    %vm755 = vmor %vm753, %vm754
    %v756 = vsel %vm755, %v748, %v752
    %v757 = vand.u32 2147483647, %v744
    %vm758 = vcmp.eq.f32.partialorder %v757, 8.507059e+37
    %v759 = vand.u32 %v744, 2147483648
    %v760 = vor.u32 1.1754944e-38, %v759
    %v761 = vsel %vm758, %v760, %v756
    %v762 = vmul.f32 1.0, %v761
    %v763 = vrcp.pop %v745
    %v764 = vmul.f32 %v745, %v763
    %v765 = vsub.f32 1.0, %v764
    %v766 = vmul.f32 %v763, %v765
    %v767 = vadd.f32 %v763, %v766
    %vm768 = vweird.f32 %v745
    %vm769 = vweird.f32 %v763
    %vm770 = vmor %vm768, %vm769
    %v771 = vsel %vm770, %v763, %v767
    %v772 = vand.u32 2147483647, %v745
    %vm773 = vcmp.eq.f32.partialorder %v772, 8.507059e+37
    %v774 = vand.u32 %v745, 2147483648
    %v775 = vor.u32 1.1754944e-38, %v774
    %v776 = vsel %vm773, %v775, %v771
    %v777 = vmul.f32 1.0, %v776
    %v778 = vrcp.pop %v746
    %v779 = vmul.f32 %v746, %v778
    %v780 = vsub.f32 1.0, %v779
    %v781 = vmul.f32 %v778, %v780
    %v782 = vadd.f32 %v778, %v781
    %vm783 = vweird.f32 %v746
    %vm784 = vweird.f32 %v778
    %vm785 = vmor %vm783, %vm784
    %v786 = vsel %vm785, %v778, %v782
    %v787 = vand.u32 2147483647, %v746
    %vm788 = vcmp.eq.f32.partialorder %v787, 8.507059e+37
    %v789 = vand.u32 %v746, 2147483648
    %v790 = vor.u32 1.1754944e-38, %v789
    %v791 = vsel %vm788, %v790, %v786
    %v792 = vmul.f32 1.0, %v791
    %v793 = vrcp.pop %v747
    %v794 = vmul.f32 %v747, %v793
    %v795 = vsub.f32 1.0, %v794
    %v796 = vmul.f32 %v793, %v795
    %v797 = vadd.f32 %v793, %v796
    %vm798 = vweird.f32 %v747
    %vm799 = vweird.f32 %v793
    %vm800 = vmor %vm798, %vm799
    %v801 = vsel %vm800, %v793, %v797
    %v802 = vand.u32 2147483647, %v747
    %vm803 = vcmp.eq.f32.partialorder %v802, 8.507059e+37
    %v804 = vand.u32 %v747, 2147483648
    %v805 = vor.u32 1.1754944e-38, %v804
    %v806 = vsel %vm803, %v805, %v801
    %v807 = vmul.f32 1.0, %v806
    %v808 = vmul.f32 %v728, %v762
    %v809 = vmul.f32 %v729, %v777
    %v810 = vmul.f32 %v730, %v792
    %v811 = vmul.f32 %v731, %v807
    %v813 = vperm.slane %v569, 0
    %vm815 = vcmask 523264
    %v817 = vsel %vm815, %v808, 0
    %v820 = vsel %vm815, %v809, 0
    %v823 = vsel %vm815, %v810, 0
    %v826 = vsel %vm815, %v811, 0
    %828 = vmatpush.msra.mxu0 0.0
    %829 = vmatpush.msra.mxu0 0.0
    %830 = vmatpush.msra.mxu0 0.0
    %831 = vmatpush.msra.mxu0 0.0
    %832 = vmatpush.msra.mxu0 0.0
    %833 = vmatpush.msra.mxu0 0.0
    %834 = vmatpush.msra.mxu0 0.0
    %835 = vmatpush.msra.mxu0 0.0
    %836 = vmatpush.msra.mxu0 %v568
    %837 = vmatpush.msra.mxu0 %v567
    %838 = vmatpush.msra.mxu0 %v566
    %839 = vmatpush.msra.mxu0 %v565
    %840 = vmatpush.msra.mxu0 %v564
    %841 = vmatpush.msra.mxu0 %v563
    %842 = vmatpush.msra.mxu0 %v562
    %843 = vmatpush.msra.mxu0 %v561
    %844 = vmatmul.f32.gmra.mxu0 %v817
    %v845 = vpop.f32.mrf.mxu0
    %v846 = vadd.f32 %v813, %v845
    %847 = vmatmul.f32.gmra.mxu0 %v820
    %v848 = vpop.f32.mrf.mxu0
    %v849 = vadd.f32 %v813, %v848
    %850 = vmatmul.f32.gmra.mxu0 %v823
    %v851 = vpop.f32.mrf.mxu0
    %v852 = vadd.f32 %v813, %v851
    %853 = vmatmul.f32.gmra.mxu0 %v826
    %v854 = vpop.f32.mrf.mxu0
    %v855 = vadd.f32 %v813, %v854
    %856 = vdwg.mxu0
    %v858 = vsel %vm519, %v549, 0
    %v861 = vsel %vm519, %v550, 0
    %863 = vmatpush.msra.mxu0 0.0
    %864 = vmatpush.msra.mxu0 0.0
    %865 = vmatpush.msra.mxu0 0.0
    %866 = vmatpush.msra.mxu0 0.0
    %867 = vmatpush.msra.mxu0 0.0
    %868 = vmatpush.msra.mxu0 0.0
    %869 = vmatpush.msra.mxu0 0.0
    %870 = vmatpush.msra.mxu0 0.0
    %871 = vmatpush.msra.mxu0 0.0
    %872 = vmatpush.msra.mxu0 0.0
    %873 = vmatpush.msra.mxu0 0.0
    %874 = vmatpush.msra.mxu0 0.0
    %875 = vmatpush.msra.mxu0 %v573
    %876 = vmatpush.msra.mxu0 %v572
    %877 = vmatpush.msra.mxu0 %v571
    %878 = vmatpush.msra.mxu0 %v570
    %879 = vmatmul.f32.gmra.mxu0 %v858
    %v880 = vpop.f32.mrf.mxu0
    %v881 = vadd.f32 0.0, %v880
    %882 = vmatmul.f32.gmra.mxu0 %v861
    %v883 = vpop.f32.mrf.mxu0
    %v884 = vadd.f32 0.0, %v883
    %885 = vdwg.mxu0
    %886 = vmatpush.msra.mxu0 0.0
    %887 = vmatpush.msra.mxu0 0.0
    %888 = vmatpush.msra.mxu0 0.0
    %889 = vmatpush.msra.mxu0 0.0
    %890 = vmatpush.msra.mxu0 0.0
    %891 = vmatpush.msra.mxu0 0.0
    %892 = vmatpush.msra.mxu0 0.0
    %893 = vmatpush.msra.mxu0 0.0
    %894 = vmatpush.msra.mxu0 0.0
    %895 = vmatpush.msra.mxu0 0.0
    %896 = vmatpush.msra.mxu0 0.0
    %897 = vmatpush.msra.mxu0 0.0
    %898 = vmatpush.msra.mxu0 %v855
    %899 = vmatpush.msra.mxu0 %v852
    %900 = vmatpush.msra.mxu0 %v849
    %901 = vmatpush.msra.mxu0 %v846
    %902 = vmatmul.f32.gmra.mxu0 %v521
    %v903 = vpop.f32.mrf.mxu0
    %v904 = vadd.f32 %v881, %v903
    %905 = vmatmul.f32.gmra.mxu0 %v524
    %v906 = vpop.f32.mrf.mxu0
    %v907 = vadd.f32 %v884, %v906
    %908 = vdwg.mxu0
    %v909 = vtanh.pop %v904
    %v910 = vtanh.pop %v907
    %v911 = vld [vmem:[%s19] sm:$0xff]
    %v912 = vld [vmem:[%s19 + $0x8] sm:$0xff]
    %v913 = vld [vmem:[%s19 + $0x10] sm:$0xff]
    %v914 = vld [vmem:[%s19 + $0x18] sm:$0xff]
    %v915 = vld [vmem:[%s20] sm:$0x1]
    %v917 = vperm.slane %v915, 0
    %v920 = vsel %vm519, %v909, 0
    %v923 = vsel %vm519, %v910, 0
    %925 = vmatpush.msra.mxu0 0.0
    %926 = vmatpush.msra.mxu0 0.0
    %927 = vmatpush.msra.mxu0 0.0
    %928 = vmatpush.msra.mxu0 0.0
    %929 = vmatpush.msra.mxu0 0.0
    %930 = vmatpush.msra.mxu0 0.0
    %931 = vmatpush.msra.mxu0 0.0
    %932 = vmatpush.msra.mxu0 0.0
    %933 = vmatpush.msra.mxu0 0.0
    %934 = vmatpush.msra.mxu0 0.0
    %935 = vmatpush.msra.mxu0 0.0
    %936 = vmatpush.msra.mxu0 0.0
    %937 = vmatpush.msra.mxu0 %v914
    %938 = vmatpush.msra.mxu0 %v913
    %939 = vmatpush.msra.mxu0 %v912
    %940 = vmatpush.msra.mxu0 %v911
    %941 = vmatmul.f32.gmra.mxu0 %v920
    %v942 = vpop.f32.mrf.mxu0
    %v943 = vadd.f32 %v917, %v942
    %944 = vmatmul.f32.gmra.mxu0 %v923
    %v945 = vpop.f32.mrf.mxu0
    %v946 = vadd.f32 %v917, %v945
    %947 = vdwg.mxu0
    %948 = vst [vmem:[#allocation2] sm:$0xff] %v943
    %949 = vst [vmem:[#allocation2 + $0x8] sm:$0xff] %v946
    // Predicated region
    $region86: #{tpu_custom_call.1} parent=1 // pred_check
      _
    $region87: #{tpu_custom_call.1} parent=1 // pred_check_branch
      %951 = sbr.rel (0) target = $region89
    $region88: #{tpu_custom_call.1} parent=1 // pred_region
      %953 = vsyncadd [#allocation3], 0
      %s954 = sshll.u32 [#allocation2], 4
      %s955 = int_to_ptr.vmem [resolvable:$true] %s954
      %s956 = sshll.u32 %s21, 4
      %s957 = int_to_ptr.hbm [resolvable:$true] %s956
      %962 = dma.vmem_to_hbm [thread:$0]  %s955, 256, %s957, [#allocation3], 128, 128, 8
    $region89: #{tpu_custom_call.1} parent=1 // pred_fallthru
      _
    // Predicated region
    $region90: #{tpu_custom_call.1} parent=1 // pred_check
      _
    $region91: #{tpu_custom_call.1} parent=1 // pred_check_branch
      %964 = sbr.rel (0) target = $region93
    $region92: #{tpu_custom_call.1} parent=1 // pred_region
      %966 = dma.done [#allocation3], 256
    $region93: #{tpu_custom_call.1} parent=1 // pred_fallthru
      _
    %967 = vsyncpa [#allocation3], 1

</llo_original>
